<compile_context>
chip_gen: v7x
topology: tpu7x:2x2x1
jax: 0.10.0
libtpu: 0.0.40
codegen_flags: <defaults>
</compile_context>

<pallas_src>
import functools

import jax
import jax.numpy as jnp
from jax.experimental import pallas as pl
from jax.experimental.pallas import tpu as pltpu


def _round_up(x, m):
    return ((x + m - 1) // m) * m


def _embedding_kernel(ids_ref, tbl_ref, out_ref, acc_ref, *, pack, d, v_chunk):
    """One (token-block, vocab-chunk) grid step of the one-hot MXU gather.

    ids_ref : VMEM (1, tbp, pack) int32 token ids for this token block
    tbl_ref : VMEM (v_chunk, d)   table rows [k*v_chunk, (k+1)*v_chunk)
    out_ref : VMEM (tbp, pack*d)  lane-packed output block
    acc_ref : VMEM (tbp, pack*d)  f32 accumulator (persists across k)
    """
    k = pl.program_id(1)

    @pl.when(k == 0)
    def _init():
        acc_ref[...] = jnp.zeros_like(acc_ref)

    ids = ids_ref[0]                                   # (tbp, pack) int32
    tbp = acc_ref.shape[0]
    # Global vocab indices carried by this chunk's columns.
    iota_v = jax.lax.broadcasted_iota(jnp.int32, (tbp, v_chunk), 1) + k * v_chunk
    tbl = tbl_ref[...]                                 # (v_chunk, d)

    for p in range(pack):                              # static, small (<= 4)
        onehot = (ids[:, p:p + 1] == iota_v).astype(tbl.dtype)
        # Default precision: exactly one non-zero product per output row, so
        # the fast single-pass MXU path is sufficient.
        acc_ref[:, p * d:(p + 1) * d] += jnp.dot(
            onehot, tbl, preferred_element_type=jnp.float32)

    @pl.when(k == pl.num_programs(1) - 1)
    def _store():
        out_ref[...] = acc_ref[...].astype(out_ref.dtype)


def word_embedding_forward(x, emb_weight, *, token_block=1024, vocab_chunk=2048):
    """Pallas equivalent of WordEmbedding.forward (eval mode).

    x          : (batch, seq) int32 token ids in [0, ntoken]
    emb_weight : (ntoken + 1, emb_dim), row `ntoken` is the zero padding row
    returns    : (batch, seq, emb_dim), same dtype as emb_weight
    """
    B, S = x.shape
    V, D = emb_weight.shape
    dtype = emb_weight.dtype
    itemsize = jnp.dtype(dtype).itemsize

    # Lane packing: pack consecutive tokens so the output block is >=128 lanes.
    pack = 128 // D if (D < 128 and 128 % D == 0) else 1
    L = pack * D

    N = B * S
    # Clamp the block to the real workload (tiny batches), then round to the
    # sublane tiling of the packed layout.
    token_block = min(token_block, _round_up(N, 8 * pack))
    token_block = max(_round_up(token_block, 8 * pack), 8 * pack)
    tbp = token_block // pack

    num_blocks = pl.cdiv(N, token_block)
    n_pad = num_blocks * token_block

    # Pad ids with the padding index (zero row); extra rows sliced off below.
    # NOTE: out-of-range ids (>= V or < 0) silently produce zero rows here,
    # whereas PyTorch would raise.
    flat_ids = x.reshape(N).astype(jnp.int32)
    flat_ids = jnp.pad(flat_ids, (0, n_pad - N), constant_values=V - 1)
    ids_packed = flat_ids.reshape(num_blocks, tbp, pack)

    # Vocab (K) tiling: single zero-padded table, streamed in bounded chunks.
    v_chunk = min(_round_up(V, 128), _round_up(vocab_chunk, 128))
    v_pad = _round_up(V, v_chunk)
    num_k = v_pad // v_chunk
    tbl_padded = jnp.zeros((v_pad, D), dtype).at[:V, :].set(emb_weight)

    # VMEM budget: double-buffered blocks + accumulator + one-hot working set.
    blk_bytes = 2 * (v_chunk * D * itemsize            # table chunk
                     + tbp * L * itemsize              # output block
                     + tbp * pack * 4)                 # ids block
    acc_bytes = tbp * L * 4
    work_bytes = 3 * tbp * v_chunk * 4                 # iota + one-hot + dot tmp
    vmem_needed = blk_bytes + acc_bytes + work_bytes + (4 << 20)
    try:
        phys_vmem = int(pltpu.get_tpu_info().vmem_capacity_bytes)
    except Exception:
        phys_vmem = 64 << 20                           # v7x per-core VMEM
    vmem_limit = int(min(max(vmem_needed, 32 << 20), int(phys_vmem * 0.85)))

    out_packed = pl.pallas_call(
        functools.partial(_embedding_kernel, pack=pack, d=D, v_chunk=v_chunk),
        out_shape=jax.ShapeDtypeStruct((num_blocks * tbp, L), dtype),
        grid=(num_blocks, num_k),
        in_specs=[
            pl.BlockSpec((1, tbp, pack), lambda b, k: (b, 0, 0)),
            pl.BlockSpec((v_chunk, D), lambda b, k: (k, 0)),
        ],
        out_specs=pl.BlockSpec((tbp, L), lambda b, k: (b, 0)),
        scratch_shapes=[pltpu.VMEM((tbp, L), jnp.float32)],
        compiler_params=pltpu.CompilerParams(
            dimension_semantics=("parallel", "arbitrary"),
            vmem_limit_bytes=vmem_limit,
        ),
    )(ids_packed, tbl_padded)

    # (num_blocks*tbp, L) row-major is exactly the (n_pad, D) flat layout.
    return out_packed.reshape(n_pad, D)[:N].reshape(B, S, D)


def init_word_embedding_params(key, ntoken, emb_dim, dtype=jnp.float32):
    """Synthetic init mirroring nn.Embedding(ntoken+1, emb_dim,
    padding_idx=ntoken): normal(0,1) rows with the padding row zeroed."""
    w = jax.random.normal(key, (ntoken + 1, emb_dim), dtype=dtype)
    w = w.at[ntoken].set(0.0)
    return w


if __name__ == "__main__":
    # Small shapes consistent with the module: batch=2, seq=8, emb_dim=32.
    ntoken = 50
    emb_dim = 32
    batch, seq = 2, 8

    key = jax.random.PRNGKey(0)
    k_w, k_x = jax.random.split(key)

    emb_weight = init_word_embedding_params(k_w, ntoken, emb_dim)
    # Token ids in [0, ntoken] — includes the padding index ntoken.
    x = jax.random.randint(k_x, (batch, seq), 0, ntoken + 1, dtype=jnp.int32)

    out = word_embedding_forward(x, emb_weight)
    out = jax.block_until_ready(out)

    # Reference check in plain JAX (gather; pad row already zero in table).
    ref = emb_weight[x]
    assert out.shape == (batch, seq, emb_dim)
    assert jnp.allclose(out, ref, rtol=1e-2, atol=1e-2), \
        "Pallas embedding mismatch vs reference"

    print("KERNEL_OK")
</pallas_src>

<mosaic_0001>
module attributes {stable_mosaic.version = 11 : i64} {
  func.func @_embedding_kernel(%arg0: i32, %arg1: i32, %arg2: memref<1x8x4xi32, #tpu.memory_space<vmem>>, %arg3: memref<128x32xf32, #tpu.memory_space<vmem>>, %arg4: memref<8x128xf32, #tpu.memory_space<vmem>>, %arg5: memref<8x128xf32, #tpu.memory_space<vmem>>) attributes {dimension_semantics = [#tpu.dimension_semantics<parallel>, #tpu.dimension_semantics<arbitrary>], iteration_bounds = array<i64: 1, 1>, scalar_prefetch = 0 : i64, scratch_operands = 1 : i64, tpu.core_type = #tpu.core_type<tc>, window_params = [{transform_indices = @transform_0, window_bounds = array<i64: 1, 8, 4>}, {transform_indices = @transform_1, window_bounds = array<i64: 128, 32>}, {transform_indices = @transform_2, window_bounds = array<i64: 8, 128>}]} {
    %c0_i32 = arith.constant 0 : i32
    %0 = arith.cmpi eq, %arg1, %c0_i32 : i32
    %1 = arith.extui %0 : i1 to i32
    %c0_i32_0 = arith.constant 0 : i32
    %2 = arith.cmpi ne, %1, %c0_i32_0 : i32
    scf.if %2 {
      %cst_23 = arith.constant 0.000000e+00 : f32
      %49 = vector.broadcast %cst_23 : f32 to vector<8x128xf32>
      %c0_24 = arith.constant 0 : index
      %c0_25 = arith.constant 0 : index
      %50 = vector.load %arg5[%c0_24, %c0_25] : memref<8x128xf32, #tpu.memory_space<vmem>>, vector<8x128xf32>
      tpu.vector_store %arg5[%c0_24, %c0_25], %49 {strides = array<i32>} : memref<8x128xf32, #tpu.memory_space<vmem>>, vector<8x128xf32>,
    } else {
    }
    %c0 = arith.constant 0 : index
    %c0_1 = arith.constant 0 : index
    %c0_2 = arith.constant 0 : index
    %3 = vector.load %arg2[%c0, %c0_1, %c0_2] : memref<1x8x4xi32, #tpu.memory_space<vmem>>, vector<1x8x4xi32>
    %4 = vector.shape_cast %3 : vector<1x8x4xi32> to vector<8x4xi32>
    %5 = tpu.iota {dimensions = array<i32: 1>} : vector<8x128xi32>
    %c128_i32 = arith.constant 128 : i32
    %6 = arith.muli %arg1, %c128_i32 : i32
    %7 = vector.broadcast %6 : i32 to vector<8x128xi32>
    %8 = arith.addi %5, %7 : vector<8x128xi32>
    %c0_3 = arith.constant 0 : index
    %c0_4 = arith.constant 0 : index
    %9 = vector.load %arg3[%c0_3, %c0_4] : memref<128x32xf32, #tpu.memory_space<vmem>>, vector<128x32xf32>
    %10 = vector.extract_strided_slice %4 {offsets = [0, 0], sizes = [8, 1], strides = [1, 1]} : vector<8x4xi32> to vector<8x1xi32>
    %11 = vector.broadcast %10 : vector<8x1xi32> to vector<8x128xi32>
    %12 = arith.cmpi eq, %11, %8 : vector<8x128xi32>
    %13 = arith.extui %12 : vector<8x128xi1> to vector<8x128xi32>
    %14 = arith.sitofp %13 : vector<8x128xi32> to vector<8x128xf32>
    %c0_5 = arith.constant 0 : index
    %c0_6 = arith.constant 0 : index
    %15 = vector.load %arg5[%c0_5, %c0_6] : memref<8x128xf32, #tpu.memory_space<vmem>>, vector<8x32xf32>
    %cst = arith.constant dense<0.000000e+00> : vector<8x32xf32>
    %16 = tpu.matmul %14, %9, %cst {dimension_numbers = #tpu.dot_dimension_numbers<[1], [0], [0], [1], [0, 0, 1, 1], [], []>} : vector<8x128xf32>, vector<128x32xf32>, vector<8x32xf32> -> vector<8x32xf32>
    %17 = arith.addf %15, %16 : vector<8x32xf32>
    %c0_7 = arith.constant 0 : index
    %c0_8 = arith.constant 0 : index
    %18 = vector.load %arg5[%c0_7, %c0_8] : memref<8x128xf32, #tpu.memory_space<vmem>>, vector<8x32xf32>
    tpu.vector_store %arg5[%c0_7, %c0_8], %17 {strides = array<i32>} : memref<8x128xf32, #tpu.memory_space<vmem>>, vector<8x32xf32>,
    %19 = vector.extract_strided_slice %4 {offsets = [0, 1], sizes = [8, 1], strides = [1, 1]} : vector<8x4xi32> to vector<8x1xi32>
    %20 = vector.broadcast %19 : vector<8x1xi32> to vector<8x128xi32>
    %21 = arith.cmpi eq, %20, %8 : vector<8x128xi32>
    %22 = arith.extui %21 : vector<8x128xi1> to vector<8x128xi32>
    %23 = arith.sitofp %22 : vector<8x128xi32> to vector<8x128xf32>
    %c0_9 = arith.constant 0 : index
    %c32 = arith.constant 32 : index
    %24 = vector.load %arg5[%c0_9, %c32] : memref<8x128xf32, #tpu.memory_space<vmem>>, vector<8x32xf32>
    %cst_10 = arith.constant dense<0.000000e+00> : vector<8x32xf32>
    %25 = tpu.matmul %23, %9, %cst_10 {dimension_numbers = #tpu.dot_dimension_numbers<[1], [0], [0], [1], [0, 0, 1, 1], [], []>} : vector<8x128xf32>, vector<128x32xf32>, vector<8x32xf32> -> vector<8x32xf32>
    %26 = arith.addf %24, %25 : vector<8x32xf32>
    %c0_11 = arith.constant 0 : index
    %c32_12 = arith.constant 32 : index
    %27 = vector.load %arg5[%c0_11, %c32_12] : memref<8x128xf32, #tpu.memory_space<vmem>>, vector<8x32xf32>
    tpu.vector_store %arg5[%c0_11, %c32_12], %26 {strides = array<i32>} : memref<8x128xf32, #tpu.memory_space<vmem>>, vector<8x32xf32>,
    %28 = vector.extract_strided_slice %4 {offsets = [0, 2], sizes = [8, 1], strides = [1, 1]} : vector<8x4xi32> to vector<8x1xi32>
    %29 = vector.broadcast %28 : vector<8x1xi32> to vector<8x128xi32>
    %30 = arith.cmpi eq, %29, %8 : vector<8x128xi32>
    %31 = arith.extui %30 : vector<8x128xi1> to vector<8x128xi32>
    %32 = arith.sitofp %31 : vector<8x128xi32> to vector<8x128xf32>
    %c0_13 = arith.constant 0 : index
    %c64 = arith.constant 64 : index
    %33 = vector.load %arg5[%c0_13, %c64] : memref<8x128xf32, #tpu.memory_space<vmem>>, vector<8x32xf32>
    %cst_14 = arith.constant dense<0.000000e+00> : vector<8x32xf32>
    %34 = tpu.matmul %32, %9, %cst_14 {dimension_numbers = #tpu.dot_dimension_numbers<[1], [0], [0], [1], [0, 0, 1, 1], [], []>} : vector<8x128xf32>, vector<128x32xf32>, vector<8x32xf32> -> vector<8x32xf32>
    %35 = arith.addf %33, %34 : vector<8x32xf32>
    %c0_15 = arith.constant 0 : index
    %c64_16 = arith.constant 64 : index
    %36 = vector.load %arg5[%c0_15, %c64_16] : memref<8x128xf32, #tpu.memory_space<vmem>>, vector<8x32xf32>
    tpu.vector_store %arg5[%c0_15, %c64_16], %35 {strides = array<i32>} : memref<8x128xf32, #tpu.memory_space<vmem>>, vector<8x32xf32>,
    %37 = vector.extract_strided_slice %4 {offsets = [0, 3], sizes = [8, 1], strides = [1, 1]} : vector<8x4xi32> to vector<8x1xi32>
    %38 = vector.broadcast %37 : vector<8x1xi32> to vector<8x128xi32>
    %39 = arith.cmpi eq, %38, %8 : vector<8x128xi32>
    %40 = arith.extui %39 : vector<8x128xi1> to vector<8x128xi32>
    %41 = arith.sitofp %40 : vector<8x128xi32> to vector<8x128xf32>
    %c0_17 = arith.constant 0 : index
    %c96 = arith.constant 96 : index
    %42 = vector.load %arg5[%c0_17, %c96] : memref<8x128xf32, #tpu.memory_space<vmem>>, vector<8x32xf32>
    %cst_18 = arith.constant dense<0.000000e+00> : vector<8x32xf32>
    %43 = tpu.matmul %41, %9, %cst_18 {dimension_numbers = #tpu.dot_dimension_numbers<[1], [0], [0], [1], [0, 0, 1, 1], [], []>} : vector<8x128xf32>, vector<128x32xf32>, vector<8x32xf32> -> vector<8x32xf32>
    %44 = arith.addf %42, %43 : vector<8x32xf32>
    %c0_19 = arith.constant 0 : index
    %c96_20 = arith.constant 96 : index
    %45 = vector.load %arg5[%c0_19, %c96_20] : memref<8x128xf32, #tpu.memory_space<vmem>>, vector<8x32xf32>
    tpu.vector_store %arg5[%c0_19, %c96_20], %44 {strides = array<i32>} : memref<8x128xf32, #tpu.memory_space<vmem>>, vector<8x32xf32>,
    %c0_i32_21 = arith.constant 0 : i32
    %46 = arith.cmpi eq, %arg1, %c0_i32_21 : i32
    %47 = arith.extui %46 : i1 to i32
    %c0_i32_22 = arith.constant 0 : i32
    %48 = arith.cmpi ne, %47, %c0_i32_22 : i32
    scf.if %48 {
      %c0_23 = arith.constant 0 : index
      %c0_24 = arith.constant 0 : index
      %49 = vector.load %arg5[%c0_23, %c0_24] : memref<8x128xf32, #tpu.memory_space<vmem>>, vector<8x128xf32>
      %c0_25 = arith.constant 0 : index
      %c0_26 = arith.constant 0 : index
      %50 = vector.load %arg4[%c0_25, %c0_26] : memref<8x128xf32, #tpu.memory_space<vmem>>, vector<8x128xf32>
      tpu.vector_store %arg4[%c0_25, %c0_26], %49 {strides = array<i32>} : memref<8x128xf32, #tpu.memory_space<vmem>>, vector<8x128xf32>,
    } else {
    }
    return
  }
  func.func @transform_0(%arg0: i32, %arg1: i32) -> (i32, i32, i32) {
    %c0_i32 = arith.constant 0 : i32
    %c0_i32_0 = arith.constant 0 : i32
    %c0_i32_1 = arith.constant 0 : i32
    return %arg0, %c0_i32, %c0_i32_0 : i32, i32, i32
  }
  func.func @transform_1(%arg0: i32, %arg1: i32) -> (i32, i32) {
    %c0_i32 = arith.constant 0 : i32
    %c0_i32_0 = arith.constant 0 : i32
    return %arg1, %c0_i32 : i32, i32
  }
  func.func @transform_2(%arg0: i32, %arg1: i32) -> (i32, i32) {
    %c0_i32 = arith.constant 0 : i32
    %c0_i32_0 = arith.constant 0 : i32
    return %arg0, %c0_i32 : i32, i32
  }
}

</mosaic_0001>

<llo_original>
// kernel: tpu_custom_call.1
$region0: #{tpu_custom_call.1}
  #allocation0 [shape = 'u32[]', space=smem, size = 0x4, offset = 0x4, fixed_abs, tag = 'smem constant byte address 0x4 - core index']
  #allocation1 [shape = 'u32[144,128]{1,0:T(1,128)}', space=vmem, size = 0x12000, scoped, tag = 'internal scratch']
  #allocation2 [shape = 'f32[8,128]{1,0:T(8,128)}', space=vmem, size = 0x1000, scoped, tag = 'scratch operand']
  %s0 = inlined_call_operand.vmem [shape: s32[1,8,4], index: 0, kind: input, shape index: {}]
  %s1 = inlined_call_operand.vmem [shape: f32[128,32], index: 1, kind: input, shape index: {}]
  %s2 = inlined_call_operand.hbm [shape: f32[8,128], index: 2, kind: output, shape index: {}]
  %s3 = sld [smem:[#allocation0]]
  $region26: #{tpu_custom_call.1} parent=0
    _
  %s5 = ssub.s32 1, %s3
  %s6 = scalar_select 0, %s5, %s3
  $region1: #{tpu_custom_call.1} parent=0
    #allocation3 [shape = 'u8[4096]{0}', space=vmem, size = 0x1000, scoped, tag = 'output window, operand 0, single buffered']
    #allocation4 [shape = 's32[1]{0}', space=sflag, size = 0x4, scoped, tag = 'scoped memory for tpu_custom_call.1']
    %7 = vsyncpa [#allocation4], 0
    // Predicated region
    $region2: #{tpu_custom_call.1} parent=1 // pred_check
      _
    $region3: #{tpu_custom_call.1} parent=1 // pred_check_branch
      %9 = sbr.rel (0) target = $region5
    $region4: #{tpu_custom_call.1} parent=1 // pred_region
      _
    $region5: #{tpu_custom_call.1} parent=1 // pred_fallthru
      _
    // Predicated region
    $region6: #{tpu_custom_call.1} parent=1 // pred_check
      _
    $region7: #{tpu_custom_call.1} parent=1 // pred_check_branch
      %11 = sbr.rel (0) target = $region9
    $region8: #{tpu_custom_call.1} parent=1 // pred_region
      _
    $region9: #{tpu_custom_call.1} parent=1 // pred_fallthru
      _
    %p12 = scmp.eq.s32.totalorder 0, 0
    // Predicated region
    $region10: #{tpu_custom_call.1} parent=1 // pred_check
      %p13 = pneg %p12
    $region11: #{tpu_custom_call.1} parent=1 // pred_check_branch
      %15 = sbr.rel (%p13) target = $region13
    $region12: #{tpu_custom_call.1} parent=1 // pred_region
      %16 = vst [vmem:[#allocation2] sm:$0xff] 0.0
    $region13: #{tpu_custom_call.1} parent=1 // pred_fallthru
      _
    %v17 = vld [vmem:[%s0] sm:$0xff]
    %v18 = vlaneseq
    %v19 = vand.u32 %v18, 127
    %s20 = smul.u32 0, 128
    %v21 = vstv %s20
    %v22 = vadd.s32 %v19, %v21
    %v23 = vld [vmem:[%s1] sm:$0xff]
    %v24 = vld [vmem:[%s1 + $0x8] sm:$0xff]
    %v25 = vld [vmem:[%s1 + $0x10] sm:$0xff]
    %v26 = vld [vmem:[%s1 + $0x18] sm:$0xff]
    %v27 = vld [vmem:[%s1 + $0x20] sm:$0xff]
    %v28 = vld [vmem:[%s1 + $0x28] sm:$0xff]
    %v29 = vld [vmem:[%s1 + $0x30] sm:$0xff]
    %v30 = vld [vmem:[%s1 + $0x38] sm:$0xff]
    %v31 = vld [vmem:[%s1 + $0x40] sm:$0xff]
    %v32 = vld [vmem:[%s1 + $0x48] sm:$0xff]
    %v33 = vld [vmem:[%s1 + $0x50] sm:$0xff]
    %v34 = vld [vmem:[%s1 + $0x58] sm:$0xff]
    %v35 = vld [vmem:[%s1 + $0x60] sm:$0xff]
    %v36 = vld [vmem:[%s1 + $0x68] sm:$0xff]
    %v37 = vld [vmem:[%s1 + $0x70] sm:$0xff]
    %v38 = vld [vmem:[%s1 + $0x78] sm:$0xff]
    %39 = vset.pattern.permute.xlu0 0
    %40 = vperm.xlu0 %39, %v17
    %v41 = vpop.permute.xlu0 %40
    %vm42 = vcmp.eq.s32.totalorder %v41, %v22
    %v43 = vsel %vm42, 1, 0
    %v44 = vcvt.s32.f32 %v43
    %v45 = vld [vmem:[#allocation2] sm:$0xff]
    %46 = vmatprep.subr.mxu0 0.0
    %47 = vmatpush1.msra.mxu0 %v23
    %48 = vmatprep.subr.mxu0 0.0
    %49 = vmatpush1.msra.mxu0 %v24
    %50 = vmatprep.subr.mxu0 0.0
    %51 = vmatpush1.msra.mxu0 %v25
    %52 = vmatprep.subr.mxu0 0.0
    %53 = vmatpush1.msra.mxu0 %v26
    %54 = vmatprep.subr.mxu0 0.0
    %55 = vmatpush1.msra.mxu0 %v27
    %56 = vmatprep.subr.mxu0 0.0
    %57 = vmatpush1.msra.mxu0 %v28
    %58 = vmatprep.subr.mxu0 0.0
    %59 = vmatpush1.msra.mxu0 %v29
    %60 = vmatprep.subr.mxu0 0.0
    %61 = vmatpush1.msra.mxu0 %v30
    %62 = vmatprep.subr.mxu0 0.0
    %63 = vmatpush1.msra.mxu0 %v31
    %64 = vmatprep.subr.mxu0 0.0
    %65 = vmatpush1.msra.mxu0 %v32
    %66 = vmatprep.subr.mxu0 0.0
    %67 = vmatpush1.msra.mxu0 %v33
    %68 = vmatprep.subr.mxu0 0.0
    %69 = vmatpush1.msra.mxu0 %v34
    %70 = vmatprep.subr.mxu0 0.0
    %71 = vmatpush1.msra.mxu0 %v35
    %72 = vmatprep.subr.mxu0 0.0
    %73 = vmatpush1.msra.mxu0 %v36
    %74 = vmatprep.subr.mxu0 0.0
    %75 = vmatpush1.msra.mxu0 %v37
    %76 = vmatprep.subr.mxu0 0.0
    %77 = vmatpush1.msra.mxu0 %v38
    %78 = vmatprep.subr.mxu0 0.0
    %79 = vmatpush1.msra.mxu0 0.0
    %80 = vmatprep.subr.mxu0 0.0
    %81 = vmatpush1.msra.mxu0 0.0
    %82 = vmatprep.subr.mxu0 0.0
    %83 = vmatpush1.msra.mxu0 0.0
    %84 = vmatprep.subr.mxu0 0.0
    %85 = vmatpush1.msra.mxu0 0.0
    %86 = vmatprep.subr.mxu0 0.0
    %87 = vmatpush1.msra.mxu0 0.0
    %88 = vmatprep.subr.mxu0 0.0
    %89 = vmatpush1.msra.mxu0 0.0
    %90 = vmatprep.subr.mxu0 0.0
    %91 = vmatpush1.msra.mxu0 0.0
    %92 = vmatprep.subr.mxu0 0.0
    %93 = vmatpush1.msra.mxu0 0.0
    %94 = vmatprep.subr.mxu0 0.0
    %95 = vmatpush1.msra.mxu0 0.0
    %96 = vmatprep.subr.mxu0 0.0
    %97 = vmatpush1.msra.mxu0 0.0
    %98 = vmatprep.subr.mxu0 0.0
    %99 = vmatpush1.msra.mxu0 0.0
    %100 = vmatprep.subr.mxu0 0.0
    %101 = vmatpush1.msra.mxu0 0.0
    %102 = vmatprep.subr.mxu0 0.0
    %103 = vmatpush1.msra.mxu0 0.0
    %104 = vmatprep.subr.mxu0 0.0
    %105 = vmatpush1.msra.mxu0 0.0
    %106 = vmatprep.subr.mxu0 0.0
    %107 = vmatpush1.msra.mxu0 0.0
    %108 = vmatprep.subr.mxu0 0.0
    %109 = vmatpush1.msra.mxu0 0.0
    %110 = vmatprep.mubr.f32.mxu0 0.0
    %111 = vmatmul.mubr.f32.gmra.mrb[0].mxu0 %v44
    %v112 = vpop.f32.mrb[0].mxu0
    %v113 = vadd.f32 0.0, %v112
    %v114 = vpop.f32.mrb[0].mxu0
    %115 = vdwg.mxu0
    %v116 = vadd.f32 %v45, %v113
    %vm117 = vcmask 261120
    %118 = vst.msk [vmem:[#allocation2] sm:$0xff] %vm117, %v116
    %119 = vset.pattern.permute.xlu0 1
    %120 = vperm.xlu0 %119, %v17
    %v121 = vpop.permute.xlu0 %120
    %vm122 = vcmp.eq.s32.totalorder %v121, %v22
    %v123 = vsel %vm122, 1, 0
    %v124 = vcvt.s32.f32 %v123
    %v125 = vld [vmem:[#allocation2] sm:$0xff]
    %126 = vmatprep.subr.mxu0 0.0
    %127 = vmatpush1.msra.mxu0 %v23
    %128 = vmatprep.subr.mxu0 0.0
    %129 = vmatpush1.msra.mxu0 %v24
    %130 = vmatprep.subr.mxu0 0.0
    %131 = vmatpush1.msra.mxu0 %v25
    %132 = vmatprep.subr.mxu0 0.0
    %133 = vmatpush1.msra.mxu0 %v26
    %134 = vmatprep.subr.mxu0 0.0
    %135 = vmatpush1.msra.mxu0 %v27
    %136 = vmatprep.subr.mxu0 0.0
    %137 = vmatpush1.msra.mxu0 %v28
    %138 = vmatprep.subr.mxu0 0.0
    %139 = vmatpush1.msra.mxu0 %v29
    %140 = vmatprep.subr.mxu0 0.0
    %141 = vmatpush1.msra.mxu0 %v30
    %142 = vmatprep.subr.mxu0 0.0
    %143 = vmatpush1.msra.mxu0 %v31
    %144 = vmatprep.subr.mxu0 0.0
    %145 = vmatpush1.msra.mxu0 %v32
    %146 = vmatprep.subr.mxu0 0.0
    %147 = vmatpush1.msra.mxu0 %v33
    %148 = vmatprep.subr.mxu0 0.0
    %149 = vmatpush1.msra.mxu0 %v34
    %150 = vmatprep.subr.mxu0 0.0
    %151 = vmatpush1.msra.mxu0 %v35
    %152 = vmatprep.subr.mxu0 0.0
    %153 = vmatpush1.msra.mxu0 %v36
    %154 = vmatprep.subr.mxu0 0.0
    %155 = vmatpush1.msra.mxu0 %v37
    %156 = vmatprep.subr.mxu0 0.0
    %157 = vmatpush1.msra.mxu0 %v38
    %158 = vmatprep.subr.mxu0 0.0
    %159 = vmatpush1.msra.mxu0 0.0
    %160 = vmatprep.subr.mxu0 0.0
    %161 = vmatpush1.msra.mxu0 0.0
    %162 = vmatprep.subr.mxu0 0.0
    %163 = vmatpush1.msra.mxu0 0.0
    %164 = vmatprep.subr.mxu0 0.0
    %165 = vmatpush1.msra.mxu0 0.0
    %166 = vmatprep.subr.mxu0 0.0
    %167 = vmatpush1.msra.mxu0 0.0
    %168 = vmatprep.subr.mxu0 0.0
    %169 = vmatpush1.msra.mxu0 0.0
    %170 = vmatprep.subr.mxu0 0.0
    %171 = vmatpush1.msra.mxu0 0.0
    %172 = vmatprep.subr.mxu0 0.0
    %173 = vmatpush1.msra.mxu0 0.0
    %174 = vmatprep.subr.mxu0 0.0
    %175 = vmatpush1.msra.mxu0 0.0
    %176 = vmatprep.subr.mxu0 0.0
    %177 = vmatpush1.msra.mxu0 0.0
    %178 = vmatprep.subr.mxu0 0.0
    %179 = vmatpush1.msra.mxu0 0.0
    %180 = vmatprep.subr.mxu0 0.0
    %181 = vmatpush1.msra.mxu0 0.0
    %182 = vmatprep.subr.mxu0 0.0
    %183 = vmatpush1.msra.mxu0 0.0
    %184 = vmatprep.subr.mxu0 0.0
    %185 = vmatpush1.msra.mxu0 0.0
    %186 = vmatprep.subr.mxu0 0.0
    %187 = vmatpush1.msra.mxu0 0.0
    %188 = vmatprep.subr.mxu0 0.0
    %189 = vmatpush1.msra.mxu0 0.0
    %190 = vmatprep.mubr.f32.mxu0 0.0
    %191 = vmatmul.mubr.f32.gmra.mrb[0].mxu0 %v124
    %v192 = vpop.f32.mrb[0].mxu0
    %v193 = vadd.f32 0.0, %v192
    %v194 = vpop.f32.mrb[0].mxu0
    %195 = vdwg.mxu0
    %197 = vrot.lane.b32.xlu0 %v193, 32
    %v198 = vpop.permute.xlu0 %197
    %v200 = vadd.f32 %v125, %v198
    %vm201 = vcmask 523520
    %202 = vst.msk [vmem:[#allocation2] sm:$0xff] %vm201, %v200
    %203 = vset.pattern.permute.xlu0 2
    %204 = vperm.xlu0 %203, %v17
    %v205 = vpop.permute.xlu0 %204
    %vm206 = vcmp.eq.s32.totalorder %v205, %v22
    %v207 = vsel %vm206, 1, 0
    %v208 = vcvt.s32.f32 %v207
    %v209 = vld [vmem:[#allocation2] sm:$0xff]
    %210 = vmatprep.subr.mxu0 0.0
    %211 = vmatpush1.msra.mxu0 %v23
    %212 = vmatprep.subr.mxu0 0.0
    %213 = vmatpush1.msra.mxu0 %v24
    %214 = vmatprep.subr.mxu0 0.0
    %215 = vmatpush1.msra.mxu0 %v25
    %216 = vmatprep.subr.mxu0 0.0
    %217 = vmatpush1.msra.mxu0 %v26
    %218 = vmatprep.subr.mxu0 0.0
    %219 = vmatpush1.msra.mxu0 %v27
    %220 = vmatprep.subr.mxu0 0.0
    %221 = vmatpush1.msra.mxu0 %v28
    %222 = vmatprep.subr.mxu0 0.0
    %223 = vmatpush1.msra.mxu0 %v29
    %224 = vmatprep.subr.mxu0 0.0
    %225 = vmatpush1.msra.mxu0 %v30
    %226 = vmatprep.subr.mxu0 0.0
    %227 = vmatpush1.msra.mxu0 %v31
    %228 = vmatprep.subr.mxu0 0.0
    %229 = vmatpush1.msra.mxu0 %v32
    %230 = vmatprep.subr.mxu0 0.0
    %231 = vmatpush1.msra.mxu0 %v33
    %232 = vmatprep.subr.mxu0 0.0
    %233 = vmatpush1.msra.mxu0 %v34
    %234 = vmatprep.subr.mxu0 0.0
    %235 = vmatpush1.msra.mxu0 %v35
    %236 = vmatprep.subr.mxu0 0.0
    %237 = vmatpush1.msra.mxu0 %v36
    %238 = vmatprep.subr.mxu0 0.0
    %239 = vmatpush1.msra.mxu0 %v37
    %240 = vmatprep.subr.mxu0 0.0
    %241 = vmatpush1.msra.mxu0 %v38
    %242 = vmatprep.subr.mxu0 0.0
    %243 = vmatpush1.msra.mxu0 0.0
    %244 = vmatprep.subr.mxu0 0.0
    %245 = vmatpush1.msra.mxu0 0.0
    %246 = vmatprep.subr.mxu0 0.0
    %247 = vmatpush1.msra.mxu0 0.0
    %248 = vmatprep.subr.mxu0 0.0
    %249 = vmatpush1.msra.mxu0 0.0
    %250 = vmatprep.subr.mxu0 0.0
    %251 = vmatpush1.msra.mxu0 0.0
    %252 = vmatprep.subr.mxu0 0.0
    %253 = vmatpush1.msra.mxu0 0.0
    %254 = vmatprep.subr.mxu0 0.0
    %255 = vmatpush1.msra.mxu0 0.0
    %256 = vmatprep.subr.mxu0 0.0
    %257 = vmatpush1.msra.mxu0 0.0
    %258 = vmatprep.subr.mxu0 0.0
    %259 = vmatpush1.msra.mxu0 0.0
    %260 = vmatprep.subr.mxu0 0.0
    %261 = vmatpush1.msra.mxu0 0.0
    %262 = vmatprep.subr.mxu0 0.0
    %263 = vmatpush1.msra.mxu0 0.0
    %264 = vmatprep.subr.mxu0 0.0
    %265 = vmatpush1.msra.mxu0 0.0
    %266 = vmatprep.subr.mxu0 0.0
    %267 = vmatpush1.msra.mxu0 0.0
    %268 = vmatprep.subr.mxu0 0.0
    %269 = vmatpush1.msra.mxu0 0.0
    %270 = vmatprep.subr.mxu0 0.0
    %271 = vmatpush1.msra.mxu0 0.0
    %272 = vmatprep.subr.mxu0 0.0
    %273 = vmatpush1.msra.mxu0 0.0
    %274 = vmatprep.mubr.f32.mxu0 0.0
    %275 = vmatmul.mubr.f32.gmra.mrb[0].mxu0 %v208
    %v276 = vpop.f32.mrb[0].mxu0
    %v277 = vadd.f32 0.0, %v276
    %v278 = vpop.f32.mrb[0].mxu0
    %279 = vdwg.mxu0
    %281 = vrot.lane.b32.xlu0 %v277, 64
    %v282 = vpop.permute.xlu0 %281
    %v284 = vadd.f32 %v209, %v282
    %vm285 = vcmask 785920
    %286 = vst.msk [vmem:[#allocation2] sm:$0xff] %vm285, %v284
    %287 = vset.pattern.permute.xlu0 3
    %288 = vperm.xlu0 %287, %v17
    %v289 = vpop.permute.xlu0 %288
    %vm290 = vcmp.eq.s32.totalorder %v289, %v22
    %v291 = vsel %vm290, 1, 0
    %v292 = vcvt.s32.f32 %v291
    %v293 = vld [vmem:[#allocation2] sm:$0xff]
    %294 = vmatprep.subr.mxu0 0.0
    %295 = vmatpush1.msra.mxu0 %v23
    %296 = vmatprep.subr.mxu0 0.0
    %297 = vmatpush1.msra.mxu0 %v24
    %298 = vmatprep.subr.mxu0 0.0
    %299 = vmatpush1.msra.mxu0 %v25
    %300 = vmatprep.subr.mxu0 0.0
    %301 = vmatpush1.msra.mxu0 %v26
    %302 = vmatprep.subr.mxu0 0.0
    %303 = vmatpush1.msra.mxu0 %v27
    %304 = vmatprep.subr.mxu0 0.0
    %305 = vmatpush1.msra.mxu0 %v28
    %306 = vmatprep.subr.mxu0 0.0
    %307 = vmatpush1.msra.mxu0 %v29
    %308 = vmatprep.subr.mxu0 0.0
    %309 = vmatpush1.msra.mxu0 %v30
    %310 = vmatprep.subr.mxu0 0.0
    %311 = vmatpush1.msra.mxu0 %v31
    %312 = vmatprep.subr.mxu0 0.0
    %313 = vmatpush1.msra.mxu0 %v32
    %314 = vmatprep.subr.mxu0 0.0
    %315 = vmatpush1.msra.mxu0 %v33
    %316 = vmatprep.subr.mxu0 0.0
    %317 = vmatpush1.msra.mxu0 %v34
    %318 = vmatprep.subr.mxu0 0.0
    %319 = vmatpush1.msra.mxu0 %v35
    %320 = vmatprep.subr.mxu0 0.0
    %321 = vmatpush1.msra.mxu0 %v36
    %322 = vmatprep.subr.mxu0 0.0
    %323 = vmatpush1.msra.mxu0 %v37
    %324 = vmatprep.subr.mxu0 0.0
    %325 = vmatpush1.msra.mxu0 %v38
    %326 = vmatprep.subr.mxu0 0.0
    %327 = vmatpush1.msra.mxu0 0.0
    %328 = vmatprep.subr.mxu0 0.0
    %329 = vmatpush1.msra.mxu0 0.0
    %330 = vmatprep.subr.mxu0 0.0
    %331 = vmatpush1.msra.mxu0 0.0
    %332 = vmatprep.subr.mxu0 0.0
    %333 = vmatpush1.msra.mxu0 0.0
    %334 = vmatprep.subr.mxu0 0.0
    %335 = vmatpush1.msra.mxu0 0.0
    %336 = vmatprep.subr.mxu0 0.0
    %337 = vmatpush1.msra.mxu0 0.0
    %338 = vmatprep.subr.mxu0 0.0
    %339 = vmatpush1.msra.mxu0 0.0
    %340 = vmatprep.subr.mxu0 0.0
    %341 = vmatpush1.msra.mxu0 0.0
    %342 = vmatprep.subr.mxu0 0.0
    %343 = vmatpush1.msra.mxu0 0.0
    %344 = vmatprep.subr.mxu0 0.0
    %345 = vmatpush1.msra.mxu0 0.0
    %346 = vmatprep.subr.mxu0 0.0
    %347 = vmatpush1.msra.mxu0 0.0
    %348 = vmatprep.subr.mxu0 0.0
    %349 = vmatpush1.msra.mxu0 0.0
    %350 = vmatprep.subr.mxu0 0.0
    %351 = vmatpush1.msra.mxu0 0.0
    %352 = vmatprep.subr.mxu0 0.0
    %353 = vmatpush1.msra.mxu0 0.0
    %354 = vmatprep.subr.mxu0 0.0
    %355 = vmatpush1.msra.mxu0 0.0
    %356 = vmatprep.subr.mxu0 0.0
    %357 = vmatpush1.msra.mxu0 0.0
    %358 = vmatprep.mubr.f32.mxu0 0.0
    %359 = vmatmul.mubr.f32.gmra.mrb[0].mxu0 %v292
    %v360 = vpop.f32.mrb[0].mxu0
    %v361 = vadd.f32 0.0, %v360
    %v362 = vpop.f32.mrb[0].mxu0
    %363 = vdwg.mxu0
    %365 = vrot.lane.b32.xlu0 %v361, 96
    %v366 = vpop.permute.xlu0 %365
    %v368 = vadd.f32 %v293, %v366
    %vm369 = vcmask 1048320
    %370 = vst.msk [vmem:[#allocation2] sm:$0xff] %vm369, %v368
    // Predicated region
    $region14: #{tpu_custom_call.1} parent=1 // pred_check
      %p371 = pneg %p12
    $region15: #{tpu_custom_call.1} parent=1 // pred_check_branch
      %373 = sbr.rel (%p371) target = $region17
    $region16: #{tpu_custom_call.1} parent=1 // pred_region
      %v374 = vld [vmem:[#allocation2] sm:$0xff]
      %375 = vst [vmem:[#allocation3] sm:$0xff] %v374
    $region17: #{tpu_custom_call.1} parent=1 // pred_fallthru
      _
    // Predicated region
    $region18: #{tpu_custom_call.1} parent=1 // pred_check
      _
    $region19: #{tpu_custom_call.1} parent=1 // pred_check_branch
      %377 = sbr.rel (0) target = $region21
    $region20: #{tpu_custom_call.1} parent=1 // pred_region
      %s379 = ssub.s32 128, 128
      %380 = vsyncadd [#allocation4], %s379
      %s382 = sshll.u32 [#allocation3], 4
      %s383 = int_to_ptr.vmem [resolvable:$true] %s382
      %385 = dma.vmem_to_hbm [thread:$0]  %s383, 128, %s2, [#allocation4]
    $region21: #{tpu_custom_call.1} parent=1 // pred_fallthru
      _
    // Predicated region
    $region22: #{tpu_custom_call.1} parent=1 // pred_check
      _
    $region23: #{tpu_custom_call.1} parent=1 // pred_check_branch
      %387 = sbr.rel (0) target = $region25
    $region24: #{tpu_custom_call.1} parent=1 // pred_region
      %388 = dma.done [#allocation4], 128
    $region25: #{tpu_custom_call.1} parent=1 // pred_fallthru
      _
    %389 = vsyncpa [#allocation4], 1

</llo_original>
